<compile_context>
chip_gen: v7x
topology: tpu7x:2x2x1
jax: 0.10.0
libtpu: 0.0.40
codegen_flags: <defaults>
</compile_context>

<pallas_src>
import numpy as np
import jax
import jax.numpy as jnp
from jax import lax
from jax.experimental import pallas as pl
from jax.experimental.pallas import tpu as pltpu


def _split_channels(num_chan, num_groups):
    split = [num_chan // num_groups for _ in range(num_groups)]
    split[0] += num_chan - sum(split)
    return split


def _build_group_toeplitz_np(weights, in_splits, out_splits, kernels, W):
    """Per-group banded Toeplitz matrices, built host-side with numpy (once).

    T[g, ci*W + wi, co*W + wo] = w_g[co, ci, t],  t = wi - wo + (k-1)//2,
    zero outside 0 <= t < k  ('same' zero padding == band truncation).
    Groups smaller than (in_max, out_max) are zero padded so every grid step
    uses one uniform block shape.
    """
    G = len(kernels)
    in_max, out_max = max(in_splits), max(out_splits)
    T = np.zeros((G, in_max * W, out_max * W), dtype=np.float32)
    wi = np.arange(W)[:, None]   # input time position  (rows of the block)
    wo = np.arange(W)[None, :]   # output time position (cols of the block)
    for g, (w_g, in_ch, out_ch, k) in enumerate(
            zip(weights, in_splits, out_splits, kernels)):
        # PyTorch padding='same' is symmetric only for odd k; even k would need
        # asymmetric padding -> refuse rather than silently shift the output.
        assert k % 2 == 1, f"even kernel size {k} is not supported"
        w_np = np.asarray(w_g, dtype=np.float64)
        assert w_np.shape == (out_ch, in_ch, k)
        left = (k - 1) // 2
        t_idx = wi - wo + left                        # (W, W) tap index
        valid = (t_idx >= 0) & (t_idx < k)
        t_cl = np.clip(t_idx, 0, k - 1)
        taps = w_np[:, :, t_cl] * valid[None, None]   # (out_ch, in_ch, W, W)
        blk = taps.transpose(1, 2, 0, 3).reshape(in_ch * W, out_ch * W)
        T[g, :in_ch * W, :out_ch * W] = blk.astype(np.float32)
    return T


def _group_matmul_kernel(x_ref, t_ref, o_ref):
    # x_ref: (M, in_max*W)   t_ref: (in_max*W, out_max*W)   o_ref: (M, out_max*W)
    o_ref[...] = jnp.dot(x_ref[...], t_ref[...],
                         preferred_element_type=jnp.float32).astype(o_ref.dtype)


class MixedConv2dPallas:
    """Pallas equivalent of _MixedConv2d.forward (split / 'same' conv / cat)."""

    def __init__(self, weights, in_splits, out_splits, kernels, width,
                 compute_dtype=jnp.float32):
        self.in_splits = tuple(int(s) for s in in_splits)
        self.out_splits = tuple(int(s) for s in out_splits)
        self.G = len(kernels)
        self.in_max = max(self.in_splits)
        self.out_max = max(self.out_splits)
        self.W = int(width)
        # compute_dtype=jnp.bfloat16 halves T HBM traffic (relax tolerances);
        # f32 is kept as the default validation path.
        self.compute_dtype = compute_dtype
        # Lane alignment: each per-group column block must be a multiple of 128
        # lanes (holds whenever W is a multiple of 128).
        assert (self.in_max * self.W) % 128 == 0, "in_max*W must be a multiple of 128"
        assert (self.out_max * self.W) % 128 == 0, "out_max*W must be a multiple of 128"
        # Build the per-group Toeplitz stack ONCE (numpy, host side) — keeps
        # the T construction off the per-call path entirely.
        t_np = _build_group_toeplitz_np(
            weights, self.in_splits, self.out_splits, kernels, self.W)
        self.T = jnp.asarray(t_np, dtype=compute_dtype)   # (G, in_max*W, out_max*W)

    def __call__(self, x):
        B, C_in, H, W = x.shape
        assert W == self.W and C_in == sum(self.in_splits)
        G, in_max, out_max = self.G, self.in_max, self.out_max
        Kg, Ng = in_max * W, out_max * W
        M = B * H   # increase B*H where the workload allows: more MXU rows per T DMA

        # (B, C_in, H, W) -> (M, G*in_max*W): rows fill sublanes, columns are
        # lane dense; group g occupies columns [g*Kg, (g+1)*Kg).
        if all(s == in_max for s in self.in_splits):
            xg = x
        else:
            parts, c0 = [], 0
            for s in self.in_splits:
                xp = x[:, c0:c0 + s]
                if s < in_max:
                    xp = jnp.pad(xp, ((0, 0), (0, in_max - s), (0, 0), (0, 0)))
                parts.append(xp)
                c0 += s
            xg = jnp.concatenate(parts, axis=1)
        x_flat = xg.transpose(0, 2, 1, 3).reshape(M, G * Kg).astype(self.compute_dtype)

        itemsize_in = jnp.dtype(self.compute_dtype).itemsize
        itemsize_out = jnp.dtype(x.dtype).itemsize
        bytes_accessed = (M * G * Kg * itemsize_in            # X
                          + G * Kg * Ng * itemsize_in          # T
                          + M * G * Ng * itemsize_out)         # out

        out_flat = pl.pallas_call(
            _group_matmul_kernel,
            out_shape=jax.ShapeDtypeStruct((M, G * Ng), x.dtype),
            grid=(G,),
            in_specs=[
                # X: the group-g input column block.
                pl.BlockSpec((M, Kg), lambda g: (0, g)),
                # T: the group-g Toeplitz block (leading group dim squeezed).
                pl.BlockSpec((None, Kg, Ng), lambda g: (g, 0, 0)),
            ],
            out_specs=pl.BlockSpec((M, Ng), lambda g: (0, g)),
            compiler_params=pltpu.CompilerParams(
                dimension_semantics=("parallel",)),   # groups are independent
            cost_estimate=pl.CostEstimate(
                flops=2 * M * Kg * Ng * G,
                transcendentals=0,
                bytes_accessed=int(bytes_accessed)),
        )(x_flat, self.T)

        # (M, G*out_max*W) -> (B, C_out, H, W)
        o = out_flat.reshape(B, H, G, out_max, W)
        if all(s == out_max for s in self.out_splits):
            o = o.reshape(B, H, G * out_max, W)
        else:
            o = jnp.concatenate(
                [o[:, :, g, :s, :] for g, s in enumerate(self.out_splits)], axis=2)
        return o.transpose(0, 2, 1, 3)


def mixed_conv2d_reference(x, weights, in_splits, kernels):
    """Pure-JAX reference (lax conv), mirrors PyTorch Conv2d padding='same'."""
    outs = []
    c0 = 0
    for w_g, in_ch, k in zip(weights, in_splits, kernels):
        x_g = x[:, c0:c0 + in_ch]
        pad = (k - 1) // 2
        w4 = jnp.asarray(w_g)[:, :, None, :]  # (O, I, 1, k)
        o = lax.conv_general_dilated(
            x_g, w4, window_strides=(1, 1),
            padding=((0, 0), (pad, pad)),
            dimension_numbers=("NCHW", "OIHW", "NCHW"))
        outs.append(o)
        c0 += in_ch
    return jnp.concatenate(outs, axis=1)


if __name__ == "__main__":
    # Module config (depthwise=False, stride=1, dilation=1 defaults).
    kernels = (15, 31, 63, 125)
    in_channels, out_channels = 4, 8
    in_splits = _split_channels(in_channels, len(kernels))    # [1, 1, 1, 1]
    out_splits = _split_channels(out_channels, len(kernels))  # [2, 2, 2, 2]

    # (batch, filter-bands, electrodes, time) as in FBMSNet; W=128 keeps every
    # per-group column block lane aligned, H=16 gives the MXU 32 rows.
    B, H, W = 2, 16, 128
    key = jax.random.PRNGKey(0)
    kx, *kws = jax.random.split(key, 1 + len(kernels))
    x = jax.random.normal(kx, (B, in_channels, H, W), dtype=jnp.float32)

    # Deterministic per-group weights, shape (out_ch, in_ch, k) (kernel h=1 squeezed).
    weights = []
    for kk, in_ch, out_ch, wkey in zip(kernels, in_splits, out_splits, kws):
        fan_in = in_ch * kk
        w = jax.random.normal(wkey, (out_ch, in_ch, kk), dtype=jnp.float32)
        weights.append(np.asarray(w) * (1.0 / np.sqrt(fan_in)))

    conv = MixedConv2dPallas(weights, in_splits, out_splits, kernels, W)
    out = jax.block_until_ready(conv(x))

    ref = mixed_conv2d_reference(x, weights, in_splits, kernels)
    np.testing.assert_allclose(np.asarray(out), np.asarray(ref),
                               rtol=1e-4, atol=1e-4)
    assert out.shape == (B, out_channels, H, W)
    print("KERNEL_OK")
</pallas_src>

<mosaic_0001>
module attributes {stable_mosaic.version = 11 : i64} {
  func.func @_group_matmul_kernel(%arg0: i32, %arg1: memref<32x128xf32, #tpu.memory_space<vmem>>, %arg2: memref<1x128x256xf32, #tpu.memory_space<vmem>>, %arg3: memref<32x256xf32, #tpu.memory_space<vmem>>) attributes {dimension_semantics = [#tpu.dimension_semantics<parallel>], iteration_bounds = array<i64: 4>, scalar_prefetch = 0 : i64, scratch_operands = 0 : i64, tpu.core_type = #tpu.core_type<tc>, window_params = [{transform_indices = @transform_0, window_bounds = array<i64: 32, 128>}, {transform_indices = @transform_1, window_bounds = array<i64: 1, 128, 256>}, {transform_indices = @transform_2, window_bounds = array<i64: 32, 256>}]} {
    %c0 = arith.constant 0 : index
    %c0_0 = arith.constant 0 : index
    %0 = vector.load %arg1[%c0, %c0_0] : memref<32x128xf32, #tpu.memory_space<vmem>>, vector<32x128xf32>
    %c0_1 = arith.constant 0 : index
    %c0_2 = arith.constant 0 : index
    %c0_3 = arith.constant 0 : index
    %1 = vector.load %arg2[%c0_1, %c0_2, %c0_3] : memref<1x128x256xf32, #tpu.memory_space<vmem>>, vector<1x128x256xf32>
    %2 = vector.shape_cast %1 : vector<1x128x256xf32> to vector<128x256xf32>
    %cst = arith.constant dense<0.000000e+00> : vector<32x256xf32>
    %3 = tpu.matmul %0, %2, %cst {dimension_numbers = #tpu.dot_dimension_numbers<[1], [0], [0], [1], [0, 0, 1, 1], [], []>} : vector<32x128xf32>, vector<128x256xf32>, vector<32x256xf32> -> vector<32x256xf32>
    %c0_4 = arith.constant 0 : index
    %c0_5 = arith.constant 0 : index
    %4 = vector.load %arg3[%c0_4, %c0_5] : memref<32x256xf32, #tpu.memory_space<vmem>>, vector<32x256xf32>
    tpu.vector_store %arg3[%c0_4, %c0_5], %3 {strides = array<i32>} : memref<32x256xf32, #tpu.memory_space<vmem>>, vector<32x256xf32>,
    return
  }
  func.func @transform_0(%arg0: i32) -> (i32, i32) {
    %c0_i32 = arith.constant 0 : i32
    %c0_i32_0 = arith.constant 0 : i32
    return %c0_i32, %arg0 : i32, i32
  }
  func.func @transform_1(%arg0: i32) -> (i32, i32, i32) {
    %c0_i32 = arith.constant 0 : i32
    %c0_i32_0 = arith.constant 0 : i32
    %c0_i32_1 = arith.constant 0 : i32
    return %arg0, %c0_i32, %c0_i32_0 : i32, i32, i32
  }
  func.func @transform_2(%arg0: i32) -> (i32, i32) {
    %c0_i32 = arith.constant 0 : i32
    %c0_i32_0 = arith.constant 0 : i32
    return %c0_i32, %arg0 : i32, i32
  }
}

</mosaic_0001>

<llo_original>
// kernel: tpu_custom_call.1
$region0: #{tpu_custom_call.1}
  #allocation0 [shape = 'u32[]', space=smem, size = 0x4, offset = 0x4, fixed_abs, tag = 'smem constant byte address 0x4 - core index']
  #allocation1 [shape = 'u32[144,128]{1,0:T(1,128)}', space=vmem, size = 0x12000, scoped, tag = 'internal scratch']
  %s0 = inlined_call_operand.hbm [shape: f32[32,512], index: 0, kind: input, shape index: {}]
  %s1 = inlined_call_operand.hbm [shape: f32[4,128,256], index: 1, kind: input, shape index: {}]
  %s2 = inlined_call_operand.hbm [shape: f32[32,1024], index: 2, kind: output, shape index: {}]
  %s3 = sld [smem:[#allocation0]]
  $region49: #{tpu_custom_call.1} parent=0
    _
  %s5 = ssub.s32 1, %s3
  %s6 = scalar_select 0, %s5, %s3
  $region1: #{tpu_custom_call.1} parent=0
    #allocation2 [shape = 'u8[32768]{0}', space=vmem, size = 0x8000, scoped, tag = 'input window, operand 0']
    #allocation3 [shape = 's32[2]{0}', space=sflag, size = 0x8, scoped, tag = 'scoped memory for tpu_custom_call.1']
    #allocation4 [shape = 's32[2]{0}', space=sflag, size = 0x8, scoped, tag = 'scoped memory for tpu_custom_call.1']
    #allocation5 [shape = 'u8[262144]{0}', space=vmem, size = 0x40000, scoped, tag = 'input window, operand 1']
    #allocation6 [shape = 's32[2]{0}', space=sflag, size = 0x8, scoped, tag = 'scoped memory for tpu_custom_call.1']
    #allocation7 [shape = 'u8[65536]{0}', space=vmem, size = 0x10000, scoped, tag = 'output window, operand 0']
    %7 = vsyncpa [#allocation3], 0
    %s8 = scalar_lea.sflag [#allocation3], 1
    %9 = vsyncpa %s8, 0
    %10 = vsyncpa [#allocation6], 0
    %s11 = scalar_lea.sflag [#allocation6], 1
    %12 = vsyncpa %s11, 0
    %13 = vsyncpa [#allocation4], 0
    %s14 = scalar_lea.sflag [#allocation4], 1
    %15 = vsyncpa %s14, 0
    loop: start=0, step=1, limit=6
    $region2: #{tpu_custom_call.1} parent=1 // loop_pre_header
      _
    $region3: #{tpu_custom_call.1} parent=1 // loop_header
      %s17 = sphi 0, %s21
      %p18 = scmp.ge.s32.totalorder %s17, 6
      %s27 = sphi 0, %s29
      %s30 = sphi 0, %s27
      %s31 = sphi 0, %s30
      %s47 = sphi 0, %s31
      %s53 = sphi 0, %s55
      %s56 = sphi 0, %s53
      %s57 = sphi 0, %s56
      %s73 = sphi 0, %s57
      %s79 = sphi 0, %s81
      %s82 = sphi 0, %s79
      %s83 = sphi 0, %s82
      %s99 = sphi 0, %s83
    $region4: #{tpu_custom_call.1} parent=1 // loop_header_branch
      %20 = sbr.rel (%p18) target = $region8
    $region5: #{tpu_custom_call.1} parent=1 // loop_body
      %s22 = ssub.s32 %s17, 1
      %s23 = ssub.s32 %s17, 2
      %s24 = sadd.s32 %s17, 1
      %s25 = ssub.s32 %s17, %s24
      %p26 = scmp.eq.s32.totalorder %s25, 0
      %s28 = sadd.s32 %s27, 1
      %s29 = scalar_select %p26, %s27, %s28
      %p32 = pneg %p26
      %p33 = scmp.eq.s32.totalorder %s17, 3
      %p34 = por %p32, %p33
      %p35 = scmp.ne.s32.totalorder %s27, %s30
      %p36 = scmp.eq.s32.totalorder %s17, 0
      %p37 = por %p35, %p36
      %p38 = scmp.ne.s32.totalorder %s27, %s30
      %p39 = scmp.eq.s32.totalorder %s22, 3
      %p40 = por %p38, %p39
      %p41 = scmp.ne.s32.totalorder %s30, %s31
      %p42 = scmp.eq.s32.totalorder %s22, 0
      %p43 = por %p41, %p42
      %p44 = scmp.ne.s32.totalorder %s30, %s31
      %p45 = scmp.eq.s32.totalorder %s23, 3
      %p46 = por %p44, %p45
      %p48 = scmp.ne.s32.totalorder %s31, %s47
      %p49 = scmp.eq.s32.totalorder %s23, 0
      %p50 = por %p48, %p49
      %s51 = ssub.s32 %s17, %s24
      %p52 = scmp.eq.s32.totalorder %s51, 0
      %s54 = sadd.s32 %s53, 1
      %s55 = scalar_select %p52, %s53, %s54
      %p58 = pneg %p52
      %p59 = scmp.eq.s32.totalorder %s17, 3
      %p60 = por %p58, %p59
      %p61 = scmp.ne.s32.totalorder %s53, %s56
      %p62 = scmp.eq.s32.totalorder %s17, 0
      %p63 = por %p61, %p62
      %p64 = scmp.ne.s32.totalorder %s53, %s56
      %p65 = scmp.eq.s32.totalorder %s22, 3
      %p66 = por %p64, %p65
      %p67 = scmp.ne.s32.totalorder %s56, %s57
      %p68 = scmp.eq.s32.totalorder %s22, 0
      %p69 = por %p67, %p68
      %p70 = scmp.ne.s32.totalorder %s56, %s57
      %p71 = scmp.eq.s32.totalorder %s23, 3
      %p72 = por %p70, %p71
      %p74 = scmp.ne.s32.totalorder %s57, %s73
      %p75 = scmp.eq.s32.totalorder %s23, 0
      %p76 = por %p74, %p75
      %s77 = ssub.s32 %s17, %s24
      %p78 = scmp.eq.s32.totalorder %s77, 0
      %s80 = sadd.s32 %s79, 1
      %s81 = scalar_select %p78, %s79, %s80
      %p84 = pneg %p78
      %p85 = scmp.eq.s32.totalorder %s17, 3
      %p86 = por %p84, %p85
      %p87 = scmp.ne.s32.totalorder %s79, %s82
      %p88 = scmp.eq.s32.totalorder %s17, 0
      %p89 = por %p87, %p88
      %p90 = scmp.ne.s32.totalorder %s79, %s82
      %p91 = scmp.eq.s32.totalorder %s22, 3
      %p92 = por %p90, %p91
      %p93 = scmp.ne.s32.totalorder %s82, %s83
      %p94 = scmp.eq.s32.totalorder %s22, 0
      %p95 = por %p93, %p94
      %p96 = scmp.ne.s32.totalorder %s82, %s83
      %p97 = scmp.eq.s32.totalorder %s23, 3
      %p98 = por %p96, %p97
      %p100 = scmp.ne.s32.totalorder %s83, %s99
      %p101 = scmp.eq.s32.totalorder %s23, 0
      %p102 = por %p100, %p101
      %p103 = scmp.le.s32.totalorder 1, %s17
      %p104 = scmp.lt.s32.totalorder %s17, 5
      %p105 = pnand %p103, %p104
      %p106 = pneg %p105
      // Predicated region
      $region9: #{tpu_custom_call.1} parent=5 // pred_check
        _
      $region10: #{tpu_custom_call.1} parent=5 // pred_check_branch
        %108 = sbr.rel (%p105) target = $region12
      $region11: #{tpu_custom_call.1} parent=5 // pred_region
        %s109 = ssub.s32 %s17, 1
      $region12: #{tpu_custom_call.1} parent=5 // pred_fallthru
        _
      %p110 = scmp.lt.s32.totalorder %s17, 4
      // Predicated region
      $region13: #{tpu_custom_call.1} parent=5 // pred_check
        %p111 = pneg %p110
      $region14: #{tpu_custom_call.1} parent=5 // pred_check_branch
        %113 = sbr.rel (%p111) target = $region16
      $region15: #{tpu_custom_call.1} parent=5 // pred_region
        // Predicated region
        $region17: #{tpu_custom_call.1} parent=15 // pred_check
          %p114 = pneg %p37
        $region18: #{tpu_custom_call.1} parent=15 // pred_check_branch
          %116 = sbr.rel (%p114) target = $region20
        $region19: #{tpu_custom_call.1} parent=15 // pred_region
          %s117 = sand.u32 %s27, 1
          %s118 = scalar_lea.sflag [#allocation3], %s117
          %s119 = sand.u32 %s27, 1
          %s120 = smul.addr %s119, 32
          %s121 = scalar_lea.vmem [#allocation2], %s120
          %s123 = ssub.s32 512, 512
          %124 = vsyncadd %s118, %s123
          %s125 = smul.addr %s17, 128
          %s126 = scalar_lea.hbm %s0, %s125
          %s127 = sshll.u32 %s121, 4
          %s128 = int_to_ptr.vmem [resolvable:$true] %s127
          %133 = dma.hbm_to_vmem [thread:$0]  %s126, 512, %s128, %s118, 512, 128, 8
        $region20: #{tpu_custom_call.1} parent=15 // pred_fallthru
          _
        // Predicated region
        $region21: #{tpu_custom_call.1} parent=15 // pred_check
          %p134 = pneg %p63
        $region22: #{tpu_custom_call.1} parent=15 // pred_check_branch
          %136 = sbr.rel (%p134) target = $region24
        $region23: #{tpu_custom_call.1} parent=15 // pred_region
          %s137 = sand.u32 %s53, 1
          %s138 = scalar_lea.sflag [#allocation6], %s137
          %s139 = sand.u32 %s53, 1
          %s140 = smul.addr %s139, 256
          %s141 = scalar_lea.vmem [#allocation5], %s140
          %s143 = ssub.s32 4096, 4096
          %144 = vsyncadd %s138, %s143
          %s145 = smul.addr %s17, 32
          %s146 = smul.addr %s145, 128
          %s147 = scalar_lea.hbm %s1, %s146
          %s148 = sshll.u32 %s141, 4
          %s149 = int_to_ptr.vmem [resolvable:$true] %s148
          %154 = dma.hbm_to_vmem [thread:$0]  %s147, 4096, %s149, %s138, 256, 256, 16
        $region24: #{tpu_custom_call.1} parent=15 // pred_fallthru
          _
      $region16: #{tpu_custom_call.1} parent=5 // pred_fallthru
        _
      %p155 = scmp.le.s32.totalorder 1, %s17
      %p156 = scmp.lt.s32.totalorder %s17, 5
      %p157 = pnand %p155, %p156
      %p158 = pneg %p157
      // Predicated region
      $region25: #{tpu_custom_call.1} parent=5 // pred_check
        _
      $region26: #{tpu_custom_call.1} parent=5 // pred_check_branch
        %160 = sbr.rel (%p157) target = $region28
      $region27: #{tpu_custom_call.1} parent=5 // pred_region
        %s161 = ssub.s32 %s17, 1
        %s162 = sand.u32 %s30, 1
        %s163 = scalar_lea.sflag [#allocation3], %s162
        %s164 = sand.u32 %s30, 1
        %s165 = smul.addr %s164, 32
        %s166 = scalar_lea.vmem [#allocation2], %s165
        // Predicated region
        $region29: #{tpu_custom_call.1} parent=27 // pred_check
          %p167 = pneg %p43
        $region30: #{tpu_custom_call.1} parent=27 // pred_check_branch
          %169 = sbr.rel (%p167) target = $region32
        $region31: #{tpu_custom_call.1} parent=27 // pred_region
          %170 = dma.done %s163, 512
        $region32: #{tpu_custom_call.1} parent=27 // pred_fallthru
          _
        %s171 = sand.u32 %s56, 1
        %s172 = scalar_lea.sflag [#allocation6], %s171
        %s173 = sand.u32 %s56, 1
        %s174 = smul.addr %s173, 256
        %s175 = scalar_lea.vmem [#allocation5], %s174
        // Predicated region
        $region33: #{tpu_custom_call.1} parent=27 // pred_check
          %p176 = pneg %p69
        $region34: #{tpu_custom_call.1} parent=27 // pred_check_branch
          %178 = sbr.rel (%p176) target = $region36
        $region35: #{tpu_custom_call.1} parent=27 // pred_region
          %179 = dma.done %s172, 4096
        $region36: #{tpu_custom_call.1} parent=27 // pred_fallthru
          _
        %s180 = sand.u32 %s30, 1
        %s181 = scalar_lea.sflag [#allocation3], %s180
        %s182 = sand.u32 %s30, 1
        %s183 = smul.addr %s182, 32
        %s184 = scalar_lea.vmem [#allocation2], %s183
        %p185 = pneg %p43
        %p186 = pneg %p40
        %s187 = sand.u32 %s56, 1
        %s188 = scalar_lea.sflag [#allocation6], %s187
        %s189 = sand.u32 %s56, 1
        %s190 = smul.addr %s189, 256
        %s191 = scalar_lea.vmem [#allocation5], %s190
        %p192 = pneg %p69
        %p193 = pneg %p66
        %p194 = pneg %p95
        %p195 = pneg %p92
        %s196 = sand.u32 %s82, 1
        %s197 = scalar_lea.sflag [#allocation4], %s196
        %s198 = sand.u32 %s82, 1
        %s199 = smul.addr %s198, 64
        %s200 = scalar_lea.vmem [#allocation7], %s199
        %s201 = smul.u32 2, %s22
        %v202 = vld [vmem:[%s166] sm:$0xff]
        %v203 = vld [vmem:[%s166 + $0x8] sm:$0xff]
        %v204 = vld [vmem:[%s166 + $0x10] sm:$0xff]
        %v205 = vld [vmem:[%s166 + $0x18] sm:$0xff]
        %v206 = vld [vmem:[%s175] sm:$0xff]
        %v207 = vld [vmem:[%s175 + $0x8] sm:$0xff]
        %v208 = vld [vmem:[%s175 + $0x10] sm:$0xff]
        %v209 = vld [vmem:[%s175 + $0x18] sm:$0xff]
        %v210 = vld [vmem:[%s175 + $0x20] sm:$0xff]
        %v211 = vld [vmem:[%s175 + $0x28] sm:$0xff]
        %v212 = vld [vmem:[%s175 + $0x30] sm:$0xff]
        %v213 = vld [vmem:[%s175 + $0x38] sm:$0xff]
        %v214 = vld [vmem:[%s175 + $0x40] sm:$0xff]
        %v215 = vld [vmem:[%s175 + $0x48] sm:$0xff]
        %v216 = vld [vmem:[%s175 + $0x50] sm:$0xff]
        %v217 = vld [vmem:[%s175 + $0x58] sm:$0xff]
        %v218 = vld [vmem:[%s175 + $0x60] sm:$0xff]
        %v219 = vld [vmem:[%s175 + $0x68] sm:$0xff]
        %v220 = vld [vmem:[%s175 + $0x70] sm:$0xff]
        %v221 = vld [vmem:[%s175 + $0x78] sm:$0xff]
        %v222 = vld [vmem:[%s175 + $0x80] sm:$0xff]
        %v223 = vld [vmem:[%s175 + $0x88] sm:$0xff]
        %v224 = vld [vmem:[%s175 + $0x90] sm:$0xff]
        %v225 = vld [vmem:[%s175 + $0x98] sm:$0xff]
        %v226 = vld [vmem:[%s175 + $0xa0] sm:$0xff]
        %v227 = vld [vmem:[%s175 + $0xa8] sm:$0xff]
        %v228 = vld [vmem:[%s175 + $0xb0] sm:$0xff]
        %v229 = vld [vmem:[%s175 + $0xb8] sm:$0xff]
        %v230 = vld [vmem:[%s175 + $0xc0] sm:$0xff]
        %v231 = vld [vmem:[%s175 + $0xc8] sm:$0xff]
        %v232 = vld [vmem:[%s175 + $0xd0] sm:$0xff]
        %v233 = vld [vmem:[%s175 + $0xd8] sm:$0xff]
        %v234 = vld [vmem:[%s175 + $0xe0] sm:$0xff]
        %v235 = vld [vmem:[%s175 + $0xe8] sm:$0xff]
        %v236 = vld [vmem:[%s175 + $0xf0] sm:$0xff]
        %v237 = vld [vmem:[%s175 + $0xf8] sm:$0xff]
        %238 = vmatprep.subr.mxu0 %v207
        %239 = vmatpush1.msra.mxu0 %v206
        %240 = vmatprep.subr.mxu0 %v209
        %241 = vmatpush1.msra.mxu0 %v208
        %242 = vmatprep.subr.mxu0 %v211
        %243 = vmatpush1.msra.mxu0 %v210
        %244 = vmatprep.subr.mxu0 %v213
        %245 = vmatpush1.msra.mxu0 %v212
        %246 = vmatprep.subr.mxu0 %v215
        %247 = vmatpush1.msra.mxu0 %v214
        %248 = vmatprep.subr.mxu0 %v217
        %249 = vmatpush1.msra.mxu0 %v216
        %250 = vmatprep.subr.mxu0 %v219
        %251 = vmatpush1.msra.mxu0 %v218
        %252 = vmatprep.subr.mxu0 %v221
        %253 = vmatpush1.msra.mxu0 %v220
        %254 = vmatprep.subr.mxu0 %v223
        %255 = vmatpush1.msra.mxu0 %v222
        %256 = vmatprep.subr.mxu0 %v225
        %257 = vmatpush1.msra.mxu0 %v224
        %258 = vmatprep.subr.mxu0 %v227
        %259 = vmatpush1.msra.mxu0 %v226
        %260 = vmatprep.subr.mxu0 %v229
        %261 = vmatpush1.msra.mxu0 %v228
        %262 = vmatprep.subr.mxu0 %v231
        %263 = vmatpush1.msra.mxu0 %v230
        %264 = vmatprep.subr.mxu0 %v233
        %265 = vmatpush1.msra.mxu0 %v232
        %266 = vmatprep.subr.mxu0 %v235
        %267 = vmatpush1.msra.mxu0 %v234
        %268 = vmatprep.subr.mxu0 %v237
        %269 = vmatpush1.msra.mxu0 %v236
        %270 = vmatprep.subr.mxu0 0.0
        %271 = vmatpush1.msra.mxu0 0.0
        %272 = vmatprep.subr.mxu0 0.0
        %273 = vmatpush1.msra.mxu0 0.0
        %274 = vmatprep.subr.mxu0 0.0
        %275 = vmatpush1.msra.mxu0 0.0
        %276 = vmatprep.subr.mxu0 0.0
        %277 = vmatpush1.msra.mxu0 0.0
        %278 = vmatprep.subr.mxu0 0.0
        %279 = vmatpush1.msra.mxu0 0.0
        %280 = vmatprep.subr.mxu0 0.0
        %281 = vmatpush1.msra.mxu0 0.0
        %282 = vmatprep.subr.mxu0 0.0
        %283 = vmatpush1.msra.mxu0 0.0
        %284 = vmatprep.subr.mxu0 0.0
        %285 = vmatpush1.msra.mxu0 0.0
        %286 = vmatprep.subr.mxu0 0.0
        %287 = vmatpush1.msra.mxu0 0.0
        %288 = vmatprep.subr.mxu0 0.0
        %289 = vmatpush1.msra.mxu0 0.0
        %290 = vmatprep.subr.mxu0 0.0
        %291 = vmatpush1.msra.mxu0 0.0
        %292 = vmatprep.subr.mxu0 0.0
        %293 = vmatpush1.msra.mxu0 0.0
        %294 = vmatprep.subr.mxu0 0.0
        %295 = vmatpush1.msra.mxu0 0.0
        %296 = vmatprep.subr.mxu0 0.0
        %297 = vmatpush1.msra.mxu0 0.0
        %298 = vmatprep.subr.mxu0 0.0
        %299 = vmatpush1.msra.mxu0 0.0
        %300 = vmatprep.subr.mxu0 0.0
        %301 = vmatpush1.msra.mxu0 0.0
        %302 = vmatprep.mubr.f32.mxu0 0.0
        %303 = vmatmul.mubr.f32.gmra.mrb[0].mxu0 %v202
        %v304 = vpop.f32.mrb[0].mxu0
        %v305 = vadd.f32 0.0, %v304
        %v306 = vpop.f32.mrb[0].mxu0
        %v307 = vadd.f32 0.0, %v306
        %308 = vmatprep.mubr.f32.mxu0 0.0
        %309 = vmatmul.mubr.f32.gmra.mrb[0].mxu0 %v203
        %v310 = vpop.f32.mrb[0].mxu0
        %v311 = vadd.f32 0.0, %v310
        %v312 = vpop.f32.mrb[0].mxu0
        %v313 = vadd.f32 0.0, %v312
        %314 = vmatprep.mubr.f32.mxu0 0.0
        %315 = vmatmul.mubr.f32.gmra.mrb[0].mxu0 %v204
        %v316 = vpop.f32.mrb[0].mxu0
        %v317 = vadd.f32 0.0, %v316
        %v318 = vpop.f32.mrb[0].mxu0
        %v319 = vadd.f32 0.0, %v318
        %320 = vmatprep.mubr.f32.mxu0 0.0
        %321 = vmatmul.mubr.f32.gmra.mrb[0].mxu0 %v205
        %v322 = vpop.f32.mrb[0].mxu0
        %v323 = vadd.f32 0.0, %v322
        %v324 = vpop.f32.mrb[0].mxu0
        %v325 = vadd.f32 0.0, %v324
        %326 = vdwg.mxu0
        %327 = vst [vmem:[%s200] sm:$0xff] %v305
        %328 = vst [vmem:[%s200 + $0x8] sm:$0xff] %v307
        %329 = vst [vmem:[%s200 + $0x10] sm:$0xff] %v311
        %330 = vst [vmem:[%s200 + $0x18] sm:$0xff] %v313
        %331 = vst [vmem:[%s200 + $0x20] sm:$0xff] %v317
        %332 = vst [vmem:[%s200 + $0x28] sm:$0xff] %v319
        %333 = vst [vmem:[%s200 + $0x30] sm:$0xff] %v323
        %334 = vst [vmem:[%s200 + $0x38] sm:$0xff] %v325
        %s335 = sand.u32 %s82, 1
        %s336 = scalar_lea.sflag [#allocation4], %s335
        %s337 = sand.u32 %s82, 1
        %s338 = smul.addr %s337, 64
        %s339 = scalar_lea.vmem [#allocation7], %s338
        // Predicated region
        $region37: #{tpu_custom_call.1} parent=27 // pred_check
          %p340 = pneg %p92
        $region38: #{tpu_custom_call.1} parent=27 // pred_check_branch
          %342 = sbr.rel (%p340) target = $region40
        $region39: #{tpu_custom_call.1} parent=27 // pred_region
          %s343 = smul.u32 2, %s22
          %s345 = ssub.s32 1024, 1024
          %346 = vsyncadd %s336, %s345
          %s347 = smul.addr %s343, 128
          %s348 = scalar_lea.hbm %s2, %s347
          %s349 = sshll.u32 %s339, 4
          %s350 = int_to_ptr.vmem [resolvable:$true] %s349
          %355 = dma.vmem_to_hbm [thread:$0]  %s350, 1024, %s348, %s336, 256, 1024, 16
        $region40: #{tpu_custom_call.1} parent=27 // pred_fallthru
          _
      $region28: #{tpu_custom_call.1} parent=5 // pred_fallthru
        _
      %p356 = scmp.le.s32.totalorder 2, %s17
      // Predicated region
      $region41: #{tpu_custom_call.1} parent=5 // pred_check
        %p357 = pneg %p356
      $region42: #{tpu_custom_call.1} parent=5 // pred_check_branch
        %359 = sbr.rel (%p357) target = $region44
      $region43: #{tpu_custom_call.1} parent=5 // pred_region
        %s360 = ssub.s32 %s17, 2
        // Predicated region
        $region45: #{tpu_custom_call.1} parent=43 // pred_check
          %p361 = pneg %p98
        $region46: #{tpu_custom_call.1} parent=43 // pred_check_branch
          %363 = sbr.rel (%p361) target = $region48
        $region47: #{tpu_custom_call.1} parent=43 // pred_region
          %s364 = sand.u32 %s83, 1
          %s365 = scalar_lea.sflag [#allocation4], %s364
          %s366 = sand.u32 %s83, 1
          %s367 = smul.addr %s366, 64
          %s368 = scalar_lea.vmem [#allocation7], %s367
          %369 = dma.done %s365, 1024
        $region48: #{tpu_custom_call.1} parent=43 // pred_fallthru
          _
      $region44: #{tpu_custom_call.1} parent=5 // pred_fallthru
        _
    $region6: #{tpu_custom_call.1} parent=1 // loop_footer
      %s21 = sadd.s32 1, %s17
    $region7: #{tpu_custom_call.1} parent=1 // loop_footer_branch
      %16 = sbr.rel target = $region3
    $region8: #{tpu_custom_call.1} parent=1 // loop_exit
      _
    %370 = vsyncpa [#allocation3], 1
    %s371 = scalar_lea.sflag [#allocation3], 1
    %372 = vsyncpa %s371, 1
    %373 = vsyncpa [#allocation6], 1
    %s374 = scalar_lea.sflag [#allocation6], 1
    %375 = vsyncpa %s374, 1
    %376 = vsyncpa [#allocation4], 1
    %s377 = scalar_lea.sflag [#allocation4], 1
    %378 = vsyncpa %s377, 1

</llo_original>
